<compile_context>
chip_gen: v6e
topology: v6e:2x2x1
jax: 0.10.0
libtpu: 0.0.40
codegen_flags: <defaults>
</compile_context>

<pallas_src>
import jax
import jax.numpy as jnp
from jax.experimental import pallas as pl
from jax.experimental.pallas import tpu as pltpu


def _round_up(x: int, m: int) -> int:
    return (x + m - 1) // m * m


def _choose_tile_l(L: int) -> int:
    """Pick the L-tile: big enough to amortize per-step overhead, small enough
    to keep >= 4 (preferably an even number of) grid steps for v7x's 2 cores."""
    candidates = [tl for tl in (1024, 512, 256) if tl <= L]
    if not candidates:
        return max(L, 1)  # tiny input: one block covering all of L (block == array dim)
    fallback = None
    for tl in candidates:
        steps = -(-L // tl)
        if steps >= 4:
            if steps % 2 == 0:
                return tl
            if fallback is None:
                fallback = tl
    return fallback if fallback is not None else candidates[-1]


def _patch_embed_kernel(x_ref, w_ref, o_ref):
    # x_ref: (TL, K) f32, w_ref: (K, Ep) bf16, o_ref: (TL, Ep) out_dtype.
    # Cast x to bf16 in-kernel (cheap VPU op hidden under the MXU), accumulate
    # in f32 on the MXU, downcast once on the way out.
    x = x_ref[...].astype(jnp.bfloat16)
    o_ref[...] = jnp.dot(
        x, w_ref[...], preferred_element_type=jnp.float32
    ).astype(o_ref.dtype)


def _build_patch_embed_call(L, K, Ep, TL, x_dtype, out_dtype, single_buffer_weight):
    grid_steps = pl.cdiv(L, TL)
    x_bytes = jnp.dtype(x_dtype).itemsize
    o_bytes = jnp.dtype(out_dtype).itemsize

    # Actual resident footprint: double-buffered x/out tiles + weight block.
    vmem_bytes = (
        2 * TL * K * x_bytes
        + 2 * TL * Ep * o_bytes
        + (1 if single_buffer_weight else 2) * K * Ep * 2
    )
    vmem_bytes = min(int(vmem_bytes * 1.25) + (2 << 20), 48 * 1024 * 1024)

    if single_buffer_weight:
        w_spec = pl.BlockSpec(
            (K, Ep), lambda i: (0, 0), pipeline_mode=pl.Buffered(1)
        )
    else:
        w_spec = pl.BlockSpec((K, Ep), lambda i: (0, 0))

    cost = pl.CostEstimate(
        flops=2 * L * K * Ep,
        transcendentals=0,
        bytes_accessed=L * K * x_bytes + K * Ep * 2 + L * Ep * o_bytes,
    )

    return pl.pallas_call(
        _patch_embed_kernel,
        out_shape=jax.ShapeDtypeStruct((L, Ep), out_dtype),
        grid_spec=pltpu.PrefetchScalarGridSpec(
            num_scalar_prefetch=0,
            grid=(grid_steps,),
            in_specs=[
                pl.BlockSpec((TL, K), lambda i: (i, 0)),  # K == full array dim
                w_spec,
            ],
            out_specs=pl.BlockSpec((TL, Ep), lambda i: (i, 0)),
        ),
        compiler_params=pltpu.CompilerParams(
            dimension_semantics=("parallel",),
            vmem_limit_bytes=vmem_bytes,
        ),
        cost_estimate=cost,
    )


def qwen2_5_vision_patch_embed(x, w_k_ep, embed_dim, out_dtype=jnp.bfloat16):
    """x: (L, K) float; w_k_ep: (K, Ep) bf16 (flattened conv weight, transposed,
    zero-padded only along E to a 128 multiple).  Returns (L, embed_dim)."""
    L, K = x.shape
    Kw, Ep = w_k_ep.shape
    assert K == Kw, (K, Kw)

    TL = _choose_tile_l(L)
    try:
        out = _build_patch_embed_call(L, K, Ep, TL, x.dtype, out_dtype, True)(x, w_k_ep)
    except Exception:
        # pl.Buffered(1) (single-buffered weight) not supported on this JAX
        # version / lowering; retry with default double-buffering.
        out = _build_patch_embed_call(L, K, Ep, TL, x.dtype, out_dtype, False)(x, w_k_ep)

    if Ep != embed_dim:  # no-op for real Qwen configs (embed_dim % 128 == 0)
        out = out[:, :embed_dim]
    return out


class Qwen25VisionPatchEmbedPallas:
    """JAX/Pallas port of Qwen2_5_VisionPatchEmbed (Conv3d with stride == kernel)."""

    def __init__(
        self,
        patch_size: int = 14,
        temporal_patch_size: int = 2,
        in_chans: int = 3,
        embed_dim: int = 1152,
        key=None,
        out_dtype=jnp.bfloat16,
    ):
        self.patch_size = patch_size
        self.temporal_patch_size = temporal_patch_size
        self.in_chans = in_chans
        self.embed_dim = embed_dim
        self.out_dtype = out_dtype
        if key is None:
            key = jax.random.PRNGKey(0)

        k_elems = in_chans * temporal_patch_size * patch_size * patch_size
        self.k_elems = k_elems
        # Conv3d weight shape: (embed_dim, in_chans, T, P, P).  f32 master copy
        # (checkpoint-loading / reference); compute copy is bf16.
        w = jax.random.normal(
            key,
            (embed_dim, in_chans, temporal_patch_size, patch_size, patch_size),
            dtype=jnp.float32,
        ) * (1.0 / jnp.sqrt(jnp.float32(k_elems)))
        self.weight = w

        # Pre-flatten to (K, E), cast to bf16 once.  K stays UNPADDED (x's block
        # uses the full-K dim); only E is zero-padded to a 128 multiple so the
        # output tiles are lane-dense.
        w_flat_t = w.reshape(embed_dim, k_elems).T  # (K, E)
        ep = _round_up(embed_dim, 128)
        w_pad = jnp.zeros((k_elems, ep), dtype=jnp.bfloat16)
        w_pad = w_pad.at[:, :embed_dim].set(w_flat_t.astype(jnp.bfloat16))
        self.w_k_ep = w_pad

    def __call__(self, x):
        # x: (L, C) where C == in_chans * T * P * P (same contract as PyTorch).
        return qwen2_5_vision_patch_embed(x, self.w_k_ep, self.embed_dim, self.out_dtype)


if __name__ == "__main__":
    key = jax.random.PRNGKey(0)
    k_w, k_x1, k_x2 = jax.random.split(key, 3)

    patch_size = 4
    temporal_patch_size = 2
    in_chans = 3
    embed_dim = 32
    C = in_chans * temporal_patch_size * patch_size * patch_size  # 96

    module = Qwen25VisionPatchEmbedPallas(
        patch_size=patch_size,
        temporal_patch_size=temporal_patch_size,
        in_chans=in_chans,
        embed_dim=embed_dim,
        key=k_w,
    )
    w_ref = module.weight.reshape(embed_dim, C).T  # (C, E) f32 reference weight

    # Test 1: tiny L (single block, block dims == array dims).
    L1 = 8
    x1 = jax.random.normal(k_x1, (L1, C), dtype=jnp.float32)
    out1 = jax.block_until_ready(module(x1))
    ref1 = x1 @ w_ref
    assert out1.shape == (L1, embed_dim), out1.shape
    assert jnp.allclose(out1.astype(jnp.float32), ref1, atol=5e-2, rtol=5e-2), float(
        jnp.max(jnp.abs(out1.astype(jnp.float32) - ref1))
    )

    # Test 2: L not a multiple of the tile -> exercises the masked partial
    # last block (grid = cdiv(L, TL)) that replaced the L padding.
    L2 = 300
    x2 = jax.random.normal(k_x2, (L2, C), dtype=jnp.float32)
    out2 = jax.block_until_ready(module(x2))
    ref2 = x2 @ w_ref
    assert out2.shape == (L2, embed_dim), out2.shape
    assert jnp.allclose(out2.astype(jnp.float32), ref2, atol=5e-2, rtol=5e-2), float(
        jnp.max(jnp.abs(out2.astype(jnp.float32) - ref2))
    )

    print("KERNEL_OK")
</pallas_src>

<mosaic_0001>
module attributes {stable_mosaic.version = 11 : i64} {
  func.func @_patch_embed_kernel(%arg0: i32, %arg1: memref<8x96xf32, #tpu.memory_space<vmem>>, %arg2: memref<96x128xbf16, #tpu.memory_space<vmem>>, %arg3: memref<8x128xbf16, #tpu.memory_space<vmem>>) attributes {dimension_semantics = [#tpu.dimension_semantics<parallel>], iteration_bounds = array<i64: 1>, scalar_prefetch = 0 : i64, scratch_operands = 0 : i64, tpu.core_type = #tpu.core_type<tc>, window_params = [{transform_indices = @transform_0, window_bounds = array<i64: 8, 96>}, {pipeline_mode = #tpu.pipeline_mode<synchronous>, transform_indices = @transform_1, window_bounds = array<i64: 96, 128>}, {transform_indices = @transform_2, window_bounds = array<i64: 8, 128>}]} {
    %c0 = arith.constant 0 : index
    %c0_0 = arith.constant 0 : index
    %0 = vector.load %arg1[%c0, %c0_0] : memref<8x96xf32, #tpu.memory_space<vmem>>, vector<8x96xf32>
    %1 = arith.truncf %0 : vector<8x96xf32> to vector<8x96xbf16>
    %c0_1 = arith.constant 0 : index
    %c0_2 = arith.constant 0 : index
    %2 = vector.load %arg2[%c0_1, %c0_2] : memref<96x128xbf16, #tpu.memory_space<vmem>>, vector<96x128xbf16>
    %cst = arith.constant dense<0.000000e+00> : vector<8x128xf32>
    %3 = tpu.matmul %1, %2, %cst {dimension_numbers = #tpu.dot_dimension_numbers<[1], [0], [0], [1], [0, 0, 1, 1], [], []>} : vector<8x96xbf16>, vector<96x128xbf16>, vector<8x128xf32> -> vector<8x128xf32>
    %4 = arith.truncf %3 : vector<8x128xf32> to vector<8x128xbf16>
    %c0_3 = arith.constant 0 : index
    %c0_4 = arith.constant 0 : index
    %5 = vector.load %arg3[%c0_3, %c0_4] : memref<8x128xbf16, #tpu.memory_space<vmem>>, vector<8x128xbf16>
    tpu.vector_store %arg3[%c0_3, %c0_4], %4 {strides = array<i32>} : memref<8x128xbf16, #tpu.memory_space<vmem>>, vector<8x128xbf16>,
    return
  }
  func.func @transform_0(%arg0: i32) -> (i32, i32) {
    %c0_i32 = arith.constant 0 : i32
    %c0_i32_0 = arith.constant 0 : i32
    return %arg0, %c0_i32 : i32, i32
  }
  func.func @transform_1(%arg0: i32) -> (i32, i32) {
    %c0_i32 = arith.constant 0 : i32
    %c0_i32_0 = arith.constant 0 : i32
    %c0_i32_1 = arith.constant 0 : i32
    return %c0_i32, %c0_i32_0 : i32, i32
  }
  func.func @transform_2(%arg0: i32) -> (i32, i32) {
    %c0_i32 = arith.constant 0 : i32
    %c0_i32_0 = arith.constant 0 : i32
    return %arg0, %c0_i32 : i32, i32
  }
}

module attributes {stable_mosaic.version = 11 : i64} {
  func.func @_patch_embed_kernel(%arg0: i32, %arg1: memref<8x96xf32, #tpu.memory_space<vmem>>, %arg2: memref<96x128xbf16, #tpu.memory_space<vmem>>, %arg3: memref<8x128xbf16, #tpu.memory_space<vmem>>) attributes {dimension_semantics = [#tpu.dimension_semantics<parallel>], iteration_bounds = array<i64: 1>, scalar_prefetch = 0 : i64, scratch_operands = 0 : i64, tpu.core_type = #tpu.core_type<tc>, window_params = [{transform_indices = @transform_0, window_bounds = array<i64: 8, 96>}, {pipeline_mode = #tpu.pipeline_mode<synchronous>, transform_indices = @transform_1, window_bounds = array<i64: 96, 128>}, {transform_indices = @transform_2, window_bounds = array<i64: 8, 128>}]} {
    %c0 = arith.constant 0 : index
    %c0_0 = arith.constant 0 : index
    %0 = vector.load %arg1[%c0, %c0_0] : memref<8x96xf32, #tpu.memory_space<vmem>>, vector<8x96xf32>
    %1 = arith.truncf %0 : vector<8x96xf32> to vector<8x96xbf16>
    %c0_1 = arith.constant 0 : index
    %c0_2 = arith.constant 0 : index
    %2 = vector.load %arg2[%c0_1, %c0_2] : memref<96x128xbf16, #tpu.memory_space<vmem>>, vector<96x128xbf16>
    %cst = arith.constant dense<0.000000e+00> : vector<8x128xf32>
    %3 = tpu.matmul %1, %2, %cst {dimension_numbers = #tpu.dot_dimension_numbers<[1], [0], [0], [1], [0, 0, 1, 1], [], []>} : vector<8x96xbf16>, vector<96x128xbf16>, vector<8x128xf32> -> vector<8x128xf32>
    %4 = arith.truncf %3 : vector<8x128xf32> to vector<8x128xbf16>
    %c0_3 = arith.constant 0 : index
    %c0_4 = arith.constant 0 : index
    %5 = vector.load %arg3[%c0_3, %c0_4] : memref<8x128xbf16, #tpu.memory_space<vmem>>, vector<8x128xbf16>
    tpu.vector_store %arg3[%c0_3, %c0_4], %4 {strides = array<i32>} : memref<8x128xbf16, #tpu.memory_space<vmem>>, vector<8x128xbf16>,
    return
  }
  func.func @transform_0(%arg0: i32) -> (i32, i32) {
    %c0_i32 = arith.constant 0 : i32
    %c0_i32_0 = arith.constant 0 : i32
    return %arg0, %c0_i32 : i32, i32
  }
  func.func @transform_1(%arg0: i32) -> (i32, i32) {
    %c0_i32 = arith.constant 0 : i32
    %c0_i32_0 = arith.constant 0 : i32
    %c0_i32_1 = arith.constant 0 : i32
    return %c0_i32, %c0_i32_0 : i32, i32
  }
  func.func @transform_2(%arg0: i32) -> (i32, i32) {
    %c0_i32 = arith.constant 0 : i32
    %c0_i32_0 = arith.constant 0 : i32
    return %arg0, %c0_i32 : i32, i32
  }
}

</mosaic_0001>

<llo_original>
// kernel: tpu_custom_call.1
$region0: #{tpu_custom_call.1}
  #allocation0 [shape = 'u32[]', space=smem, size = 0x4, offset = 0x4, fixed_abs, tag = 'smem constant byte address 0x4 - core index']
  #allocation1 [shape = 'u32[144,128]{1,0:T(1,128)}', space=vmem, size = 0x12000, scoped, tag = 'internal scratch']
  %s0 = inlined_call_operand.hbm [shape: f32[8,96], index: 0, kind: input, shape index: {}]
  %s1 = inlined_call_operand.hbm [shape: bf16[96,128], index: 1, kind: input, shape index: {}]
  %s2 = inlined_call_operand.hbm [shape: bf16[8,128], index: 2, kind: output, shape index: {}]
  %s3 = sld [smem:[#allocation0]]
  $region26: #{tpu_custom_call.1} parent=0
    _
  %s5 = ssub.s32 1, %s3
  %s6 = scalar_select 0, %s5, %s3
  $region1: #{tpu_custom_call.1} parent=0
    #allocation2 [shape = 'u8[4096]{0}', space=vmem, size = 0x1000, scoped, tag = 'input window, operand 0, single buffered']
    #allocation3 [shape = 's32[1]{0}', space=sflag, size = 0x4, scoped, tag = 'scoped memory for tpu_custom_call.1']
    #allocation4 [shape = 's32[1]{0}', space=sflag, size = 0x4, scoped, tag = 'scoped memory for tpu_custom_call.1']
    #allocation5 [shape = 'u8[24576]{0}', space=vmem, size = 0x6000, scoped, tag = 'input window, operand 1, single buffered']
    #allocation6 [shape = 's32[1]{0}', space=sflag, size = 0x4, scoped, tag = 'scoped memory for tpu_custom_call.1']
    #allocation7 [shape = 'u8[2048]{0}', space=vmem, size = 0x800, scoped, tag = 'output window, operand 0, single buffered']
    %7 = vsyncpa [#allocation3], 0
    %8 = vsyncpa [#allocation6], 0
    %9 = vsyncpa [#allocation4], 0
    // Predicated region
    $region2: #{tpu_custom_call.1} parent=1 // pred_check
      _
    $region3: #{tpu_custom_call.1} parent=1 // pred_check_branch
      %11 = sbr.rel (0) target = $region5
    $region4: #{tpu_custom_call.1} parent=1 // pred_region
      %s13 = ssub.s32 128, 128
      %14 = vsyncadd [#allocation3], %s13
      %s16 = sshll.u32 [#allocation2], 4
      %s17 = int_to_ptr.vmem [resolvable:$true] %s16
      %19 = dma.hbm_to_vmem [thread:$0]  %s0, 128, %s17, [#allocation3]
    $region5: #{tpu_custom_call.1} parent=1 // pred_fallthru
      _
    // Predicated region
    $region6: #{tpu_custom_call.1} parent=1 // pred_check
      _
    $region7: #{tpu_custom_call.1} parent=1 // pred_check_branch
      %21 = sbr.rel (0) target = $region9
    $region8: #{tpu_custom_call.1} parent=1 // pred_region
      %s23 = ssub.s32 768, 768
      %24 = vsyncadd [#allocation6], %s23
      %s25 = sshll.u32 [#allocation5], 4
      %s26 = int_to_ptr.vmem [resolvable:$true] %s25
      %31 = dma.hbm_to_vmem [thread:$0]  %s1, 768, %s26, [#allocation6], 64, 64, 4
    $region9: #{tpu_custom_call.1} parent=1 // pred_fallthru
      _
    // Predicated region
    $region10: #{tpu_custom_call.1} parent=1 // pred_check
      _
    $region11: #{tpu_custom_call.1} parent=1 // pred_check_branch
      %33 = sbr.rel (0) target = $region13
    $region12: #{tpu_custom_call.1} parent=1 // pred_region
      %34 = dma.done [#allocation3], 128
    $region13: #{tpu_custom_call.1} parent=1 // pred_fallthru
      _
    // Predicated region
    $region14: #{tpu_custom_call.1} parent=1 // pred_check
      _
    $region15: #{tpu_custom_call.1} parent=1 // pred_check_branch
      %36 = sbr.rel (0) target = $region17
    $region16: #{tpu_custom_call.1} parent=1 // pred_region
      %37 = dma.done [#allocation6], 768
    $region17: #{tpu_custom_call.1} parent=1 // pred_fallthru
      _
    %v39 = vld [vmem:[#allocation2] sm:$0xff]
    %v40 = vpack.c.bf16 %v39, %v39
    %v41 = vld [vmem:[#allocation5] sm:$0xf]
    %v42 = vld [vmem:[#allocation5 + $0x4] sm:$0xf]
    %v43 = vld [vmem:[#allocation5 + $0x8] sm:$0xf]
    %v44 = vld [vmem:[#allocation5 + $0xc] sm:$0xf]
    %v45 = vld [vmem:[#allocation5 + $0x10] sm:$0xf]
    %v46 = vld [vmem:[#allocation5 + $0x14] sm:$0xf]
    %v47 = vld [vmem:[#allocation5 + $0x18] sm:$0xf]
    %v48 = vld [vmem:[#allocation5 + $0x1c] sm:$0xf]
    %v49 = vld [vmem:[#allocation5 + $0x20] sm:$0xf]
    %v50 = vld [vmem:[#allocation5 + $0x24] sm:$0xf]
    %v51 = vld [vmem:[#allocation5 + $0x28] sm:$0xf]
    %v52 = vld [vmem:[#allocation5 + $0x2c] sm:$0xf]
    %v65 = vunpack.c.l.b16 %v41
    %v66 = vunpack.c.l.b16 %v42
    %v67 = vunpack.c.l.b16 %v43
    %v68 = vunpack.c.l.b16 %v44
    %v69 = vunpack.c.l.b16 %v45
    %v70 = vunpack.c.l.b16 %v46
    %v71 = vunpack.c.l.b16 %v47
    %v72 = vunpack.c.l.b16 %v48
    %v73 = vunpack.c.l.b16 %v49
    %v74 = vunpack.c.l.b16 %v50
    %v75 = vunpack.c.l.b16 %v51
    %v76 = vunpack.c.l.b16 %v52
    %v77 = vpack.c.b16 %v66, %v65
    %v78 = vpack.c.b16 %v68, %v67
    %v79 = vpack.c.b16 %v70, %v69
    %v80 = vpack.c.b16 %v72, %v71
    %v81 = vpack.c.b16 %v74, %v73
    %v82 = vpack.c.b16 %v76, %v75
    %vm89 = vcmask 785408
    %v91 = vsel %vm89, %v40, 0
    %93 = vmatprep.subr.bf16.mxu0 0
    %94 = vmatpush1.bf16.msra.mxu0 0
    %95 = vmatprep.subr.bf16.mxu0 0
    %96 = vmatpush1.bf16.msra.mxu0 0
    %97 = vmatprep.subr.bf16.mxu0 0
    %98 = vmatpush1.bf16.msra.mxu0 %v82
    %99 = vmatprep.subr.bf16.mxu0 0
    %100 = vmatpush1.bf16.msra.mxu0 %v81
    %101 = vmatprep.subr.bf16.mxu0 0
    %102 = vmatpush1.bf16.msra.mxu0 %v80
    %103 = vmatprep.subr.bf16.mxu0 0
    %104 = vmatpush1.bf16.msra.mxu0 %v79
    %105 = vmatprep.subr.bf16.mxu0 0
    %106 = vmatpush1.bf16.msra.mxu0 %v78
    %107 = vmatprep.subr.bf16.mxu0 0
    %108 = vmatpush1.bf16.msra.mxu0 %v77
    %109 = vmatprep.subr.bf16.mxu0 0
    %110 = vmatpush2.bf16.msra.mxu0 0
    %111 = vmatprep.subr.bf16.mxu0 0
    %112 = vmatpush2.bf16.msra.mxu0 0
    %113 = vmatprep.subr.bf16.mxu0 0
    %114 = vmatpush2.bf16.msra.mxu0 0
    %115 = vmatprep.subr.bf16.mxu0 0
    %116 = vmatpush2.bf16.msra.mxu0 0
    %117 = vmatprep.subr.bf16.mxu0 0
    %118 = vmatpush2.bf16.msra.mxu0 0
    %119 = vmatprep.subr.bf16.mxu0 0
    %120 = vmatpush2.bf16.msra.mxu0 0
    %121 = vmatprep.subr.bf16.mxu0 0
    %122 = vmatpush2.bf16.msra.mxu0 0
    %123 = vmatprep.subr.bf16.mxu0 0
    %124 = vmatpush2.bf16.msra.mxu0 0
    %125 = vmatprep.mubr.bf16.mxu0 0
    %126 = vmatmul.mubr.bf16.gmra.mxu0 %v91
    %v127 = vpop.f32.mrf.mxu0
    %v128 = vadd.f32 0.0, %v127
    %v129 = vpop.f32.mrf.mxu0
    %v130 = vpop.f32.mrf.mxu0
    %v131 = vpop.f32.mrf.mxu0
    %132 = vdwg.mxu0
    %v133 = vpack.c.bf16 %v128, %v128
    %134 = vst [vmem:[#allocation7] sm:$0xf] %v133
    // Predicated region
    $region18: #{tpu_custom_call.1} parent=1 // pred_check
      _
    $region19: #{tpu_custom_call.1} parent=1 // pred_check_branch
      %136 = sbr.rel (0) target = $region21
    $region20: #{tpu_custom_call.1} parent=1 // pred_region
      %s138 = ssub.s32 64, 64
      %139 = vsyncadd [#allocation4], %s138
      %s141 = sshll.u32 [#allocation7], 4
      %s142 = int_to_ptr.vmem [resolvable:$true] %s141
      %144 = dma.vmem_to_hbm [thread:$0]  %s142, 64, %s2, [#allocation4]
    $region21: #{tpu_custom_call.1} parent=1 // pred_fallthru
      _
    // Predicated region
    $region22: #{tpu_custom_call.1} parent=1 // pred_check
      _
    $region23: #{tpu_custom_call.1} parent=1 // pred_check_branch
      %146 = sbr.rel (0) target = $region25
    $region24: #{tpu_custom_call.1} parent=1 // pred_region
      %147 = dma.done [#allocation4], 64
    $region25: #{tpu_custom_call.1} parent=1 // pred_fallthru
      _
    %148 = vsyncpa [#allocation3], 1
    %149 = vsyncpa [#allocation6], 1
    %150 = vsyncpa [#allocation4], 1

// kernel: tpu_custom_call.1
$region0: #{tpu_custom_call.1}
  #allocation0 [shape = 'u32[]', space=smem, size = 0x4, offset = 0x4, fixed_abs, tag = 'smem constant byte address 0x4 - core index']
  #allocation1 [shape = 'u32[144,128]{1,0:T(1,128)}', space=vmem, size = 0x12000, scoped, tag = 'internal scratch']
  %s0 = inlined_call_operand.hbm [shape: f32[8,96], index: 0, kind: input, shape index: {}]
  %s1 = inlined_call_operand.hbm [shape: bf16[96,128], index: 1, kind: input, shape index: {}]
  %s2 = inlined_call_operand.hbm [shape: bf16[8,128], index: 2, kind: output, shape index: {}]
  %s3 = sld [smem:[#allocation0]]
  $region26: #{tpu_custom_call.1} parent=0
    _
  %s5 = ssub.s32 1, %s3
  %s6 = scalar_select 0, %s5, %s3
  $region1: #{tpu_custom_call.1} parent=0
    #allocation2 [shape = 'u8[4096]{0}', space=vmem, size = 0x1000, scoped, tag = 'input window, operand 0, single buffered']
    #allocation3 [shape = 's32[1]{0}', space=sflag, size = 0x4, scoped, tag = 'scoped memory for tpu_custom_call.1']
    #allocation4 [shape = 's32[1]{0}', space=sflag, size = 0x4, scoped, tag = 'scoped memory for tpu_custom_call.1']
    #allocation5 [shape = 'u8[24576]{0}', space=vmem, size = 0x6000, scoped, tag = 'input window, operand 1, single buffered']
    #allocation6 [shape = 's32[1]{0}', space=sflag, size = 0x4, scoped, tag = 'scoped memory for tpu_custom_call.1']
    #allocation7 [shape = 'u8[2048]{0}', space=vmem, size = 0x800, scoped, tag = 'output window, operand 0, single buffered']
    %7 = vsyncpa [#allocation3], 0
    %8 = vsyncpa [#allocation6], 0
    %9 = vsyncpa [#allocation4], 0
    // Predicated region
    $region2: #{tpu_custom_call.1} parent=1 // pred_check
      _
    $region3: #{tpu_custom_call.1} parent=1 // pred_check_branch
      %11 = sbr.rel (0) target = $region5
    $region4: #{tpu_custom_call.1} parent=1 // pred_region
      %s13 = ssub.s32 128, 128
      %14 = vsyncadd [#allocation3], %s13
      %s16 = sshll.u32 [#allocation2], 4
      %s17 = int_to_ptr.vmem [resolvable:$true] %s16
      %19 = dma.hbm_to_vmem [thread:$0]  %s0, 128, %s17, [#allocation3]
    $region5: #{tpu_custom_call.1} parent=1 // pred_fallthru
      _
    // Predicated region
    $region6: #{tpu_custom_call.1} parent=1 // pred_check
      _
    $region7: #{tpu_custom_call.1} parent=1 // pred_check_branch
      %21 = sbr.rel (0) target = $region9
    $region8: #{tpu_custom_call.1} parent=1 // pred_region
      %s23 = ssub.s32 768, 768
      %24 = vsyncadd [#allocation6], %s23
      %s25 = sshll.u32 [#allocation5], 4
      %s26 = int_to_ptr.vmem [resolvable:$true] %s25
      %31 = dma.hbm_to_vmem [thread:$0]  %s1, 768, %s26, [#allocation6], 64, 64, 4
    $region9: #{tpu_custom_call.1} parent=1 // pred_fallthru
      _
    // Predicated region
    $region10: #{tpu_custom_call.1} parent=1 // pred_check
      _
    $region11: #{tpu_custom_call.1} parent=1 // pred_check_branch
      %33 = sbr.rel (0) target = $region13
    $region12: #{tpu_custom_call.1} parent=1 // pred_region
      %34 = dma.done [#allocation3], 128
    $region13: #{tpu_custom_call.1} parent=1 // pred_fallthru
      _
    // Predicated region
    $region14: #{tpu_custom_call.1} parent=1 // pred_check
      _
    $region15: #{tpu_custom_call.1} parent=1 // pred_check_branch
      %36 = sbr.rel (0) target = $region17
    $region16: #{tpu_custom_call.1} parent=1 // pred_region
      %37 = dma.done [#allocation6], 768
    $region17: #{tpu_custom_call.1} parent=1 // pred_fallthru
      _
    %v39 = vld [vmem:[#allocation2] sm:$0xff]
    %v40 = vpack.c.bf16 %v39, %v39
    %v41 = vld [vmem:[#allocation5] sm:$0xf]
    %v42 = vld [vmem:[#allocation5 + $0x4] sm:$0xf]
    %v43 = vld [vmem:[#allocation5 + $0x8] sm:$0xf]
    %v44 = vld [vmem:[#allocation5 + $0xc] sm:$0xf]
    %v45 = vld [vmem:[#allocation5 + $0x10] sm:$0xf]
    %v46 = vld [vmem:[#allocation5 + $0x14] sm:$0xf]
    %v47 = vld [vmem:[#allocation5 + $0x18] sm:$0xf]
    %v48 = vld [vmem:[#allocation5 + $0x1c] sm:$0xf]
    %v49 = vld [vmem:[#allocation5 + $0x20] sm:$0xf]
    %v50 = vld [vmem:[#allocation5 + $0x24] sm:$0xf]
    %v51 = vld [vmem:[#allocation5 + $0x28] sm:$0xf]
    %v52 = vld [vmem:[#allocation5 + $0x2c] sm:$0xf]
    %v65 = vunpack.c.l.b16 %v41
    %v66 = vunpack.c.l.b16 %v42
    %v67 = vunpack.c.l.b16 %v43
    %v68 = vunpack.c.l.b16 %v44
    %v69 = vunpack.c.l.b16 %v45
    %v70 = vunpack.c.l.b16 %v46
    %v71 = vunpack.c.l.b16 %v47
    %v72 = vunpack.c.l.b16 %v48
    %v73 = vunpack.c.l.b16 %v49
    %v74 = vunpack.c.l.b16 %v50
    %v75 = vunpack.c.l.b16 %v51
    %v76 = vunpack.c.l.b16 %v52
    %v77 = vpack.c.b16 %v66, %v65
    %v78 = vpack.c.b16 %v68, %v67
    %v79 = vpack.c.b16 %v70, %v69
    %v80 = vpack.c.b16 %v72, %v71
    %v81 = vpack.c.b16 %v74, %v73
    %v82 = vpack.c.b16 %v76, %v75
    %vm89 = vcmask 785408
    %v91 = vsel %vm89, %v40, 0
    %93 = vmatprep.subr.bf16.mxu0 0
    %94 = vmatpush1.bf16.msra.mxu0 0
    %95 = vmatprep.subr.bf16.mxu0 0
    %96 = vmatpush1.bf16.msra.mxu0 0
    %97 = vmatprep.subr.bf16.mxu0 0
    %98 = vmatpush1.bf16.msra.mxu0 %v82
    %99 = vmatprep.subr.bf16.mxu0 0
    %100 = vmatpush1.bf16.msra.mxu0 %v81
    %101 = vmatprep.subr.bf16.mxu0 0
    %102 = vmatpush1.bf16.msra.mxu0 %v80
    %103 = vmatprep.subr.bf16.mxu0 0
    %104 = vmatpush1.bf16.msra.mxu0 %v79
    %105 = vmatprep.subr.bf16.mxu0 0
    %106 = vmatpush1.bf16.msra.mxu0 %v78
    %107 = vmatprep.subr.bf16.mxu0 0
    %108 = vmatpush1.bf16.msra.mxu0 %v77
    %109 = vmatprep.subr.bf16.mxu0 0
    %110 = vmatpush2.bf16.msra.mxu0 0
    %111 = vmatprep.subr.bf16.mxu0 0
    %112 = vmatpush2.bf16.msra.mxu0 0
    %113 = vmatprep.subr.bf16.mxu0 0
    %114 = vmatpush2.bf16.msra.mxu0 0
    %115 = vmatprep.subr.bf16.mxu0 0
    %116 = vmatpush2.bf16.msra.mxu0 0
    %117 = vmatprep.subr.bf16.mxu0 0
    %118 = vmatpush2.bf16.msra.mxu0 0
    %119 = vmatprep.subr.bf16.mxu0 0
    %120 = vmatpush2.bf16.msra.mxu0 0
    %121 = vmatprep.subr.bf16.mxu0 0
    %122 = vmatpush2.bf16.msra.mxu0 0
    %123 = vmatprep.subr.bf16.mxu0 0
    %124 = vmatpush2.bf16.msra.mxu0 0
    %125 = vmatprep.mubr.bf16.mxu0 0
    %126 = vmatmul.mubr.bf16.gmra.mxu0 %v91
    %v127 = vpop.f32.mrf.mxu0
    %v128 = vadd.f32 0.0, %v127
    %v129 = vpop.f32.mrf.mxu0
    %v130 = vpop.f32.mrf.mxu0
    %v131 = vpop.f32.mrf.mxu0
    %132 = vdwg.mxu0
    %v133 = vpack.c.bf16 %v128, %v128
    %134 = vst [vmem:[#allocation7] sm:$0xf] %v133
    // Predicated region
    $region18: #{tpu_custom_call.1} parent=1 // pred_check
      _
    $region19: #{tpu_custom_call.1} parent=1 // pred_check_branch
      %136 = sbr.rel (0) target = $region21
    $region20: #{tpu_custom_call.1} parent=1 // pred_region
      %s138 = ssub.s32 64, 64
      %139 = vsyncadd [#allocation4], %s138
      %s141 = sshll.u32 [#allocation7], 4
      %s142 = int_to_ptr.vmem [resolvable:$true] %s141
      %144 = dma.vmem_to_hbm [thread:$0]  %s142, 64, %s2, [#allocation4]
    $region21: #{tpu_custom_call.1} parent=1 // pred_fallthru
      _
    // Predicated region
    $region22: #{tpu_custom_call.1} parent=1 // pred_check
      _
    $region23: #{tpu_custom_call.1} parent=1 // pred_check_branch
      %146 = sbr.rel (0) target = $region25
    $region24: #{tpu_custom_call.1} parent=1 // pred_region
      %147 = dma.done [#allocation4], 64
    $region25: #{tpu_custom_call.1} parent=1 // pred_fallthru
      _
    %148 = vsyncpa [#allocation3], 1
    %149 = vsyncpa [#allocation6], 1
    %150 = vsyncpa [#allocation4], 1

</llo_original>
